<compile_context>
chip_gen: v5e
topology: v5e:2x2
jax: 0.10.0
libtpu: 0.0.40
codegen_flags: <defaults>
</compile_context>

<pallas_src>
import jax
import jax.numpy as jnp
from jax import lax
from jax.experimental import pallas as pl
from jax.experimental.pallas import tpu as pltpu


def _conv_rows(x_ref, w_ref, H):
    """3 sublane-shifted MXU matmuls: acc[h, (w,o)] = sum_kh x[h+kh, :] @ B[kh]."""
    KH = w_ref.shape[0]
    acc = jnp.dot(x_ref[0, 0:H, :], w_ref[0], preferred_element_type=jnp.float32)
    for kh in range(1, KH):  # static unroll (3); shift is along the sublane (H) axis only
        acc = acc + jnp.dot(x_ref[0, kh:kh + H, :], w_ref[kh],
                            preferred_element_type=jnp.float32)
    return acc


# ----------------------------------------------------------------------------
# Kernel 1: per-batch BN partial statistics (no conv-output writeback).
# ----------------------------------------------------------------------------
def _conv_stats_kernel(x_ref, w_ref, stats_ref):
    # x_ref    : (1, H+2, Kp)     bf16  padded input rows, lanes = (w_pad, cin)
    # w_ref    : (KH, Kp, W*Cout) bf16  Toeplitz-expanded weight, lanes = (w, cout)
    # stats_ref: (1, 2, W*Cout)   f32   row 0: sum over H, row 1: sum of squares
    KH = w_ref.shape[0]
    H = x_ref.shape[1] - (KH - 1)
    acc = _conv_rows(x_ref, w_ref, H)
    stats_ref[0, 0, :] = jnp.sum(acc, axis=0)
    stats_ref[0, 1, :] = jnp.sum(acc * acc, axis=0)


# ----------------------------------------------------------------------------
# Kernel 2: recompute conv + fused per-lane affine (folded BN) + ReLU.
# ----------------------------------------------------------------------------
def _conv_bn_relu_kernel(x_ref, w_ref, affine_ref, o_ref):
    # affine_ref : (2, W*Cout) f32 — row 0: scale, row 1: shift (per-lane)
    # o_ref      : (1, H, W*Cout) f32 — lane-dense output
    H = o_ref.shape[1]
    acc = _conv_rows(x_ref, w_ref, H)
    scale = affine_ref[0, :]
    shift = affine_ref[1, :]
    o_ref[0] = jnp.maximum(acc * scale + shift, 0.0).astype(o_ref.dtype)


def conv_block_forward(x_nchw, w_oihw, bias, gamma, beta, eps=1e-5):
    """relu(batch_norm(conv2d(x))) with train-mode (batch, biased-var) stats."""
    # The conv bias is mathematically a no-op before train-mode BN (the batch
    # mean subtraction cancels any per-channel constant), so it is not used.
    del bias

    N, Cin, H, W = x_nchw.shape
    Cout, _, KH, KW = w_oihw.shape
    ph, pw = KH // 2, KW // 2                    # 'same' padding (1, 1)
    Hp, Wp = H + 2 * ph, W + 2 * pw
    WCout = W * Cout                             # lane axis of the output (128 here)
    Kin = Wp * Cin                               # contraction width before padding
    Kp = ((Kin + 127) // 128) * 128              # pad K to a lane-dense multiple of 128

    # ---- input: NCHW -> padded channels-last rows (N, Hp, Wp*Cin) -> K-padded bf16
    x = jnp.transpose(x_nchw, (0, 2, 3, 1)).astype(jnp.float32)
    x = jnp.pad(x, ((0, 0), (ph, ph), (pw, pw), (0, 0)))
    x_rows = x.reshape(N, Hp, Kin)
    x_rows = jnp.pad(x_rows, ((0, 0), (0, 0), (0, Kp - Kin))).astype(jnp.bfloat16)

    # ---- weights: OIHW -> HWIO -> Toeplitz expansion B[kh, (wp,c), (w,o)]
    w_hwio = jnp.transpose(w_oihw, (2, 3, 1, 0)).astype(jnp.float32)   # (KH, KW, Cin, Cout)
    kw = jnp.arange(Wp)[:, None] - jnp.arange(W)[None, :]              # (Wp, W)
    valid = (kw >= 0) & (kw < KW)
    B = w_hwio[:, jnp.clip(kw, 0, KW - 1)]                             # (KH, Wp, W, Cin, Cout)
    B = jnp.where(valid[None, :, :, None, None], B, 0.0)
    B = B.transpose(0, 1, 3, 2, 4).reshape(KH, Kin, WCout)
    B = jnp.pad(B, ((0, 0), (0, Kp - Kin), (0, 0))).astype(jnp.bfloat16)

    # ---- pass 1: BN partial statistics only (tiny writeback, no f32 intermediate)
    stats = pl.pallas_call(
        _conv_stats_kernel,
        out_shape=jax.ShapeDtypeStruct((N, 2, WCout), jnp.float32),
        grid=(N,),
        in_specs=[
            pl.BlockSpec((1, Hp, Kp), lambda n: (n, 0, 0)),
            pl.BlockSpec((KH, Kp, WCout), lambda n: (0, 0, 0)),
        ],
        out_specs=pl.BlockSpec((1, 2, WCout), lambda n: (n, 0, 0)),
        compiler_params=pltpu.CompilerParams(
            dimension_semantics=("parallel",)),
    )(x_rows, B)
    # TODO(synk): at production sizes add an H-strip grid axis (more pipelined
    # steps per TensorCore) and re-derive vmem_limit_bytes per chip (v7x: 64 MiB).

    # ---- fold the tiny (2, W*Cout) statistics into per-channel BN scale/shift (XLA)
    lane_sum = jnp.sum(stats[:, 0, :], axis=0)           # (WCout,)
    lane_ssq = jnp.sum(stats[:, 1, :], axis=0)
    cnt = jnp.float32(N * H * W)
    ch_sum = lane_sum.reshape(W, Cout).sum(axis=0)       # (Cout,)
    ch_ssq = lane_ssq.reshape(W, Cout).sum(axis=0)
    mean = ch_sum / cnt
    var = jnp.maximum(ch_ssq / cnt - mean * mean, 0.0)   # biased (train-mode) variance
    scale = gamma.astype(jnp.float32) * lax.rsqrt(var + eps)
    shift = beta.astype(jnp.float32) - mean * scale
    affine = jnp.stack([jnp.tile(scale, W), jnp.tile(shift, W)], axis=0)  # (2, WCout)

    # ---- pass 2: recompute conv (cheap MXU work) + fused affine + ReLU,
    #              single lane-dense store of the final output
    out = pl.pallas_call(
        _conv_bn_relu_kernel,
        out_shape=jax.ShapeDtypeStruct((N, H, WCout), jnp.float32),
        grid=(N,),
        in_specs=[
            pl.BlockSpec((1, Hp, Kp), lambda n: (n, 0, 0)),
            pl.BlockSpec((KH, Kp, WCout), lambda n: (0, 0, 0)),
            pl.BlockSpec((2, WCout), lambda n: (0, 0)),
        ],
        out_specs=pl.BlockSpec((1, H, WCout), lambda n: (n, 0, 0)),
        compiler_params=pltpu.CompilerParams(
            dimension_semantics=("parallel",)),
    )(x_rows, B, affine)

    # (N, H, W*Cout) -> NCHW at the API boundary (PyTorch parity)
    return jnp.transpose(out.reshape(N, H, W, Cout), (0, 3, 1, 2))


def _reference_forward(x_nchw, w_oihw, bias, gamma, beta, eps=1e-5):
    """Pure-JAX reference (PyTorch module semantics in train mode, incl. bias)."""
    y = lax.conv_general_dilated(
        x_nchw, w_oihw, window_strides=(1, 1), padding=((1, 1), (1, 1)),
        dimension_numbers=("NCHW", "OIHW", "NCHW"))
    y = y + bias[None, :, None, None]
    mean = jnp.mean(y, axis=(0, 2, 3), keepdims=True)
    var = jnp.mean(jnp.square(y - mean), axis=(0, 2, 3), keepdims=True)
    yn = (y - mean) / jnp.sqrt(var + eps)
    yn = yn * gamma[None, :, None, None] + beta[None, :, None, None]
    return jnp.maximum(yn, 0.0)


if __name__ == "__main__":
    key = jax.random.PRNGKey(0)
    k_x, k_w, k_b, k_g, k_be = jax.random.split(key, 5)

    N, Cin, H, W = 2, 4, 16, 16
    Cout, KH, KW = 8, 3, 3

    x = jax.random.normal(k_x, (N, Cin, H, W), dtype=jnp.float32)
    w = jax.random.normal(k_w, (Cout, Cin, KH, KW), dtype=jnp.float32) * 0.1
    b = jax.random.normal(k_b, (Cout,), dtype=jnp.float32) * 0.05
    gamma = 1.0 + 0.1 * jax.random.normal(k_g, (Cout,), dtype=jnp.float32)
    beta = 0.05 * jax.random.normal(k_be, (Cout,), dtype=jnp.float32)

    out = jax.jit(conv_block_forward)(x, w, b, gamma, beta)
    out = jax.block_until_ready(out)

    ref = _reference_forward(x, w, b, gamma, beta)
    assert out.shape == (N, Cout, H, W)
    # bf16 MXU inputs (f32 accumulation) -> slightly looser tolerance
    assert jnp.allclose(out, ref, rtol=2e-2, atol=2e-2), "mismatch vs reference"

    print("KERNEL_OK")
</pallas_src>

<mosaic_0001>
module attributes {stable_mosaic.version = 11 : i64} {
  func.func @_conv_stats_kernel(%arg0: i32, %arg1: memref<1x18x128xbf16, #tpu.memory_space<vmem>>, %arg2: memref<3x128x128xbf16, #tpu.memory_space<vmem>>, %arg3: memref<1x2x128xf32, #tpu.memory_space<vmem>>) attributes {dimension_semantics = [#tpu.dimension_semantics<parallel>], iteration_bounds = array<i64: 2>, scalar_prefetch = 0 : i64, scratch_operands = 0 : i64, tpu.core_type = #tpu.core_type<tc>, window_params = [{transform_indices = @transform_0, window_bounds = array<i64: 1, 18, 128>}, {pipeline_mode = #tpu.pipeline_mode<synchronous>, transform_indices = @transform_1, window_bounds = array<i64: 3, 128, 128>}, {transform_indices = @transform_2, window_bounds = array<i64: 1, 2, 128>}]} {
    %c0 = arith.constant 0 : index
    %c0_0 = arith.constant 0 : index
    %c0_1 = arith.constant 0 : index
    %0 = vector.load %arg1[%c0, %c0_0, %c0_1] : memref<1x18x128xbf16, #tpu.memory_space<vmem>>, vector<1x16x128xbf16>
    %1 = vector.shape_cast %0 : vector<1x16x128xbf16> to vector<16x128xbf16>
    %c0_2 = arith.constant 0 : index
    %c0_3 = arith.constant 0 : index
    %c0_4 = arith.constant 0 : index
    %2 = vector.load %arg2[%c0_2, %c0_3, %c0_4] : memref<3x128x128xbf16, #tpu.memory_space<vmem>>, vector<1x128x128xbf16>
    %3 = vector.shape_cast %2 : vector<1x128x128xbf16> to vector<128x128xbf16>
    %cst = arith.constant dense<0.000000e+00> : vector<16x128xf32>
    %4 = tpu.matmul %1, %3, %cst {dimension_numbers = #tpu.dot_dimension_numbers<[1], [0], [0], [1], [0, 0, 1, 1], [], []>} : vector<16x128xbf16>, vector<128x128xbf16>, vector<16x128xf32> -> vector<16x128xf32>
    %c0_5 = arith.constant 0 : index
    %c1 = arith.constant 1 : index
    %c0_6 = arith.constant 0 : index
    %5 = vector.load %arg1[%c0_5, %c1, %c0_6] : memref<1x18x128xbf16, #tpu.memory_space<vmem>>, vector<1x16x128xbf16>
    %6 = vector.shape_cast %5 : vector<1x16x128xbf16> to vector<16x128xbf16>
    %c1_7 = arith.constant 1 : index
    %c0_8 = arith.constant 0 : index
    %c0_9 = arith.constant 0 : index
    %7 = vector.load %arg2[%c1_7, %c0_8, %c0_9] : memref<3x128x128xbf16, #tpu.memory_space<vmem>>, vector<1x128x128xbf16>
    %8 = vector.shape_cast %7 : vector<1x128x128xbf16> to vector<128x128xbf16>
    %cst_10 = arith.constant dense<0.000000e+00> : vector<16x128xf32>
    %9 = tpu.matmul %6, %8, %cst_10 {dimension_numbers = #tpu.dot_dimension_numbers<[1], [0], [0], [1], [0, 0, 1, 1], [], []>} : vector<16x128xbf16>, vector<128x128xbf16>, vector<16x128xf32> -> vector<16x128xf32>
    %10 = arith.addf %4, %9 : vector<16x128xf32>
    %c0_11 = arith.constant 0 : index
    %c2 = arith.constant 2 : index
    %c0_12 = arith.constant 0 : index
    %11 = vector.load %arg1[%c0_11, %c2, %c0_12] : memref<1x18x128xbf16, #tpu.memory_space<vmem>>, vector<1x16x128xbf16>
    %12 = vector.shape_cast %11 : vector<1x16x128xbf16> to vector<16x128xbf16>
    %c2_13 = arith.constant 2 : index
    %c0_14 = arith.constant 0 : index
    %c0_15 = arith.constant 0 : index
    %13 = vector.load %arg2[%c2_13, %c0_14, %c0_15] : memref<3x128x128xbf16, #tpu.memory_space<vmem>>, vector<1x128x128xbf16>
    %14 = vector.shape_cast %13 : vector<1x128x128xbf16> to vector<128x128xbf16>
    %cst_16 = arith.constant dense<0.000000e+00> : vector<16x128xf32>
    %15 = tpu.matmul %12, %14, %cst_16 {dimension_numbers = #tpu.dot_dimension_numbers<[1], [0], [0], [1], [0, 0, 1, 1], [], []>} : vector<16x128xbf16>, vector<128x128xbf16>, vector<16x128xf32> -> vector<16x128xf32>
    %16 = arith.addf %10, %15 : vector<16x128xf32>
    %cst_17 = arith.constant dense<0.000000e+00> : vector<128xf32>
    %17 = vector.multi_reduction <add>, %16, %cst_17 [0] : vector<16x128xf32> to vector<128xf32>
    %c0_18 = arith.constant 0 : index
    %c0_19 = arith.constant 0 : index
    %c0_20 = arith.constant 0 : index
    %18 = vector.load %arg3[%c0_18, %c0_19, %c0_20] : memref<1x2x128xf32, #tpu.memory_space<vmem>>, vector<1x1x128xf32>
    %19 = vector.shape_cast %18 : vector<1x1x128xf32> to vector<128xf32>
    %20 = vector.shape_cast %17 : vector<128xf32> to vector<1x1x128xf32>
    tpu.vector_store %arg3[%c0_18, %c0_19, %c0_20], %20 {strides = array<i32>} : memref<1x2x128xf32, #tpu.memory_space<vmem>>, vector<1x1x128xf32>,
    %21 = arith.mulf %16, %16 : vector<16x128xf32>
    %cst_21 = arith.constant dense<0.000000e+00> : vector<128xf32>
    %22 = vector.multi_reduction <add>, %21, %cst_21 [0] : vector<16x128xf32> to vector<128xf32>
    %c0_22 = arith.constant 0 : index
    %c1_23 = arith.constant 1 : index
    %c0_24 = arith.constant 0 : index
    %23 = vector.load %arg3[%c0_22, %c1_23, %c0_24] : memref<1x2x128xf32, #tpu.memory_space<vmem>>, vector<1x1x128xf32>
    %24 = vector.shape_cast %23 : vector<1x1x128xf32> to vector<128xf32>
    %25 = vector.shape_cast %22 : vector<128xf32> to vector<1x1x128xf32>
    tpu.vector_store %arg3[%c0_22, %c1_23, %c0_24], %25 {strides = array<i32>} : memref<1x2x128xf32, #tpu.memory_space<vmem>>, vector<1x1x128xf32>,
    return
  }
  func.func @transform_0(%arg0: i32) -> (i32, i32, i32) {
    %c0_i32 = arith.constant 0 : i32
    %c0_i32_0 = arith.constant 0 : i32
    %c0_i32_1 = arith.constant 0 : i32
    return %arg0, %c0_i32, %c0_i32_0 : i32, i32, i32
  }
  func.func @transform_1(%arg0: i32) -> (i32, i32, i32) {
    %c0_i32 = arith.constant 0 : i32
    %c0_i32_0 = arith.constant 0 : i32
    %c0_i32_1 = arith.constant 0 : i32
    %c0_i32_2 = arith.constant 0 : i32
    return %c0_i32, %c0_i32_0, %c0_i32_1 : i32, i32, i32
  }
  func.func @transform_2(%arg0: i32) -> (i32, i32, i32) {
    %c0_i32 = arith.constant 0 : i32
    %c0_i32_0 = arith.constant 0 : i32
    %c0_i32_1 = arith.constant 0 : i32
    return %arg0, %c0_i32, %c0_i32_0 : i32, i32, i32
  }
}

module attributes {stable_mosaic.version = 11 : i64} {
  func.func @_conv_bn_relu_kernel(%arg0: i32, %arg1: memref<1x18x128xbf16, #tpu.memory_space<vmem>>, %arg2: memref<3x128x128xbf16, #tpu.memory_space<vmem>>, %arg3: memref<2x128xf32, #tpu.memory_space<vmem>>, %arg4: memref<1x16x128xf32, #tpu.memory_space<vmem>>) attributes {dimension_semantics = [#tpu.dimension_semantics<parallel>], iteration_bounds = array<i64: 2>, scalar_prefetch = 0 : i64, scratch_operands = 0 : i64, tpu.core_type = #tpu.core_type<tc>, window_params = [{transform_indices = @transform_0, window_bounds = array<i64: 1, 18, 128>}, {pipeline_mode = #tpu.pipeline_mode<synchronous>, transform_indices = @transform_1, window_bounds = array<i64: 3, 128, 128>}, {pipeline_mode = #tpu.pipeline_mode<synchronous>, transform_indices = @transform_2, window_bounds = array<i64: 2, 128>}, {transform_indices = @transform_3, window_bounds = array<i64: 1, 16, 128>}]} {
    %c0 = arith.constant 0 : index
    %c0_0 = arith.constant 0 : index
    %c0_1 = arith.constant 0 : index
    %0 = vector.load %arg1[%c0, %c0_0, %c0_1] : memref<1x18x128xbf16, #tpu.memory_space<vmem>>, vector<1x16x128xbf16>
    %1 = vector.shape_cast %0 : vector<1x16x128xbf16> to vector<16x128xbf16>
    %c0_2 = arith.constant 0 : index
    %c0_3 = arith.constant 0 : index
    %c0_4 = arith.constant 0 : index
    %2 = vector.load %arg2[%c0_2, %c0_3, %c0_4] : memref<3x128x128xbf16, #tpu.memory_space<vmem>>, vector<1x128x128xbf16>
    %3 = vector.shape_cast %2 : vector<1x128x128xbf16> to vector<128x128xbf16>
    %cst = arith.constant dense<0.000000e+00> : vector<16x128xf32>
    %4 = tpu.matmul %1, %3, %cst {dimension_numbers = #tpu.dot_dimension_numbers<[1], [0], [0], [1], [0, 0, 1, 1], [], []>} : vector<16x128xbf16>, vector<128x128xbf16>, vector<16x128xf32> -> vector<16x128xf32>
    %c0_5 = arith.constant 0 : index
    %c1 = arith.constant 1 : index
    %c0_6 = arith.constant 0 : index
    %5 = vector.load %arg1[%c0_5, %c1, %c0_6] : memref<1x18x128xbf16, #tpu.memory_space<vmem>>, vector<1x16x128xbf16>
    %6 = vector.shape_cast %5 : vector<1x16x128xbf16> to vector<16x128xbf16>
    %c1_7 = arith.constant 1 : index
    %c0_8 = arith.constant 0 : index
    %c0_9 = arith.constant 0 : index
    %7 = vector.load %arg2[%c1_7, %c0_8, %c0_9] : memref<3x128x128xbf16, #tpu.memory_space<vmem>>, vector<1x128x128xbf16>
    %8 = vector.shape_cast %7 : vector<1x128x128xbf16> to vector<128x128xbf16>
    %cst_10 = arith.constant dense<0.000000e+00> : vector<16x128xf32>
    %9 = tpu.matmul %6, %8, %cst_10 {dimension_numbers = #tpu.dot_dimension_numbers<[1], [0], [0], [1], [0, 0, 1, 1], [], []>} : vector<16x128xbf16>, vector<128x128xbf16>, vector<16x128xf32> -> vector<16x128xf32>
    %10 = arith.addf %4, %9 : vector<16x128xf32>
    %c0_11 = arith.constant 0 : index
    %c2 = arith.constant 2 : index
    %c0_12 = arith.constant 0 : index
    %11 = vector.load %arg1[%c0_11, %c2, %c0_12] : memref<1x18x128xbf16, #tpu.memory_space<vmem>>, vector<1x16x128xbf16>
    %12 = vector.shape_cast %11 : vector<1x16x128xbf16> to vector<16x128xbf16>
    %c2_13 = arith.constant 2 : index
    %c0_14 = arith.constant 0 : index
    %c0_15 = arith.constant 0 : index
    %13 = vector.load %arg2[%c2_13, %c0_14, %c0_15] : memref<3x128x128xbf16, #tpu.memory_space<vmem>>, vector<1x128x128xbf16>
    %14 = vector.shape_cast %13 : vector<1x128x128xbf16> to vector<128x128xbf16>
    %cst_16 = arith.constant dense<0.000000e+00> : vector<16x128xf32>
    %15 = tpu.matmul %12, %14, %cst_16 {dimension_numbers = #tpu.dot_dimension_numbers<[1], [0], [0], [1], [0, 0, 1, 1], [], []>} : vector<16x128xbf16>, vector<128x128xbf16>, vector<16x128xf32> -> vector<16x128xf32>
    %16 = arith.addf %10, %15 : vector<16x128xf32>
    %c0_17 = arith.constant 0 : index
    %c0_18 = arith.constant 0 : index
    %17 = vector.load %arg3[%c0_17, %c0_18] : memref<2x128xf32, #tpu.memory_space<vmem>>, vector<1x128xf32>
    %18 = vector.shape_cast %17 : vector<1x128xf32> to vector<128xf32>
    %c1_19 = arith.constant 1 : index
    %c0_20 = arith.constant 0 : index
    %19 = vector.load %arg3[%c1_19, %c0_20] : memref<2x128xf32, #tpu.memory_space<vmem>>, vector<1x128xf32>
    %20 = vector.shape_cast %19 : vector<1x128xf32> to vector<128xf32>
    %21 = vector.shape_cast %18 : vector<128xf32> to vector<1x128xf32>
    %22 = vector.broadcast %21 : vector<1x128xf32> to vector<16x128xf32>
    %23 = arith.mulf %16, %22 : vector<16x128xf32>
    %24 = vector.shape_cast %20 : vector<128xf32> to vector<1x128xf32>
    %25 = vector.broadcast %24 : vector<1x128xf32> to vector<16x128xf32>
    %26 = arith.addf %23, %25 : vector<16x128xf32>
    %cst_21 = arith.constant 0.000000e+00 : f32
    %27 = vector.broadcast %cst_21 : f32 to vector<16x128xf32>
    %28 = arith.maximumf %26, %27 : vector<16x128xf32>
    %c0_22 = arith.constant 0 : index
    %c0_23 = arith.constant 0 : index
    %c0_24 = arith.constant 0 : index
    %29 = vector.load %arg4[%c0_22, %c0_23, %c0_24] : memref<1x16x128xf32, #tpu.memory_space<vmem>>, vector<1x16x128xf32>
    %30 = vector.shape_cast %29 : vector<1x16x128xf32> to vector<16x128xf32>
    %31 = vector.shape_cast %28 : vector<16x128xf32> to vector<1x16x128xf32>
    tpu.vector_store %arg4[%c0_22, %c0_23, %c0_24], %31 {strides = array<i32>} : memref<1x16x128xf32, #tpu.memory_space<vmem>>, vector<1x16x128xf32>,
    return
  }
  func.func @transform_0(%arg0: i32) -> (i32, i32, i32) {
    %c0_i32 = arith.constant 0 : i32
    %c0_i32_0 = arith.constant 0 : i32
    %c0_i32_1 = arith.constant 0 : i32
    return %arg0, %c0_i32, %c0_i32_0 : i32, i32, i32
  }
  func.func @transform_1(%arg0: i32) -> (i32, i32, i32) {
    %c0_i32 = arith.constant 0 : i32
    %c0_i32_0 = arith.constant 0 : i32
    %c0_i32_1 = arith.constant 0 : i32
    %c0_i32_2 = arith.constant 0 : i32
    return %c0_i32, %c0_i32_0, %c0_i32_1 : i32, i32, i32
  }
  func.func @transform_2(%arg0: i32) -> (i32, i32) {
    %c0_i32 = arith.constant 0 : i32
    %c0_i32_0 = arith.constant 0 : i32
    %c0_i32_1 = arith.constant 0 : i32
    return %c0_i32, %c0_i32_0 : i32, i32
  }
  func.func @transform_3(%arg0: i32) -> (i32, i32, i32) {
    %c0_i32 = arith.constant 0 : i32
    %c0_i32_0 = arith.constant 0 : i32
    %c0_i32_1 = arith.constant 0 : i32
    return %arg0, %c0_i32, %c0_i32_0 : i32, i32, i32
  }
}

</mosaic_0001>

<llo_original>
// kernel: tile.13
$region0: #{tile.13}
  #allocation0 [shape = 's32[1]{0}', space=sflag, size = 0x4, scoped, tag = 'scoped memory for tile.13']
  %s0 = inlined_call_operand.vmem [shape: f32[8], index: 0, kind: input, shape index: {}]
  %s1 = inlined_call_operand.vmem [shape: f32[16,8], index: 1, kind: output, shape index: {}]
  // Predicated region
  $region2: #{tile.13} parent=0 // pred_check
    _
  $region3: #{tile.13} parent=0 // pred_check_branch
    %3 = sbr.rel (0) target = $region5
  $region4: #{tile.13} parent=0 // pred_region
    _
  $region5: #{tile.13} parent=0 // pred_fallthru
    _
  %v4 = vld [vmem:[%s0] ss:$0 sm:$0xff]
  %5 = vst [vmem:[%s1] sm:$0xff] %v4
  %s6 = scalar_lea.vmem %s1, 8
  %7 = vst [vmem:[%s6] sm:$0xff] %v4

// kernel: tile.18
$region0: #{tile.18}
  %s0 = inlined_call_operand.vmem [shape: f32[16,8], index: 0, kind: input, shape index: {}]
  %s1 = inlined_call_operand.vmem [shape: f32[1,128], index: 1, kind: output, shape index: {}]
  $region1: #{tile.18} parent=0
    #allocation0 [shape = 'u8[4096]{0}', space=vmem, size = 0x1000, scoped, tag = 'scoped mem for output reshape']
    %v2 = vld [vmem:[%s0] sm:$0x1]
    %vm3 = vcmask 64512
    %4 = vst.msk [vmem:[#allocation0] sm:$0x1] %vm3, %v2
    %s5 = scalar_lea.vmem %s0, 15
    %v6 = vld [vmem:[%s5] sm:$0x1]
    %7 = vrot.lane.b32.xlu0 %v6, 120
    %v8 = vpop.permute.xlu0 %7
    %vm9 = vcmask 1048512
    %10 = vst.msk [vmem:[#allocation0] sm:$0x1] %vm9, %v8
    %s11 = scalar_lea.vmem %s0, 14
    %v12 = vld [vmem:[%s11] sm:$0x1]
    %13 = vrot.lane.b32.xlu0 %v12, 112
    %v14 = vpop.permute.xlu0 %13
    %vm15 = vcmask 982912
    %16 = vst.msk [vmem:[#allocation0] sm:$0x1] %vm15, %v14
    %s17 = scalar_lea.vmem %s0, 13
    %v18 = vld [vmem:[%s17] sm:$0x1]
    %19 = vrot.lane.b32.xlu0 %v18, 104
    %v20 = vpop.permute.xlu0 %19
    %vm21 = vcmask 917312
    %22 = vst.msk [vmem:[#allocation0] sm:$0x1] %vm21, %v20
    %s23 = scalar_lea.vmem %s0, 12
    %v24 = vld [vmem:[%s23] sm:$0x1]
    %25 = vrot.lane.b32.xlu0 %v24, 96
    %v26 = vpop.permute.xlu0 %25
    %vm27 = vcmask 851712
    %28 = vst.msk [vmem:[#allocation0] sm:$0x1] %vm27, %v26
    %s29 = scalar_lea.vmem %s0, 11
    %v30 = vld [vmem:[%s29] sm:$0x1]
    %31 = vrot.lane.b32.xlu0 %v30, 88
    %v32 = vpop.permute.xlu0 %31
    %vm33 = vcmask 786112
    %34 = vst.msk [vmem:[#allocation0] sm:$0x1] %vm33, %v32
    %s35 = scalar_lea.vmem %s0, 10
    %v36 = vld [vmem:[%s35] sm:$0x1]
    %37 = vrot.lane.b32.xlu0 %v36, 80
    %v38 = vpop.permute.xlu0 %37
    %vm39 = vcmask 720512
    %40 = vst.msk [vmem:[#allocation0] sm:$0x1] %vm39, %v38
    %s41 = scalar_lea.vmem %s0, 9
    %v42 = vld [vmem:[%s41] sm:$0x1]
    %43 = vrot.lane.b32.xlu0 %v42, 72
    %v44 = vpop.permute.xlu0 %43
    %vm45 = vcmask 654912
    %46 = vst.msk [vmem:[#allocation0] sm:$0x1] %vm45, %v44
    %s47 = scalar_lea.vmem %s0, 8
    %v48 = vld [vmem:[%s47] sm:$0x1]
    %49 = vrot.lane.b32.xlu0 %v48, 64
    %v50 = vpop.permute.xlu0 %49
    %vm51 = vcmask 589312
    %52 = vst.msk [vmem:[#allocation0] sm:$0x1] %vm51, %v50
    %s53 = scalar_lea.vmem %s0, 7
    %v54 = vld [vmem:[%s53] sm:$0x1]
    %55 = vrot.lane.b32.xlu0 %v54, 56
    %v56 = vpop.permute.xlu0 %55
    %vm57 = vcmask 523712
    %58 = vst.msk [vmem:[#allocation0] sm:$0x1] %vm57, %v56
    %s59 = scalar_lea.vmem %s0, 6
    %v60 = vld [vmem:[%s59] sm:$0x1]
    %61 = vrot.lane.b32.xlu0 %v60, 48
    %v62 = vpop.permute.xlu0 %61
    %vm63 = vcmask 458112
    %64 = vst.msk [vmem:[#allocation0] sm:$0x1] %vm63, %v62
    %s65 = scalar_lea.vmem %s0, 5
    %v66 = vld [vmem:[%s65] sm:$0x1]
    %67 = vrot.lane.b32.xlu0 %v66, 40
    %v68 = vpop.permute.xlu0 %67
    %vm69 = vcmask 392512
    %70 = vst.msk [vmem:[#allocation0] sm:$0x1] %vm69, %v68
    %s71 = scalar_lea.vmem %s0, 4
    %v72 = vld [vmem:[%s71] sm:$0x1]
    %73 = vrot.lane.b32.xlu0 %v72, 32
    %v74 = vpop.permute.xlu0 %73
    %vm75 = vcmask 326912
    %76 = vst.msk [vmem:[#allocation0] sm:$0x1] %vm75, %v74
    %s77 = scalar_lea.vmem %s0, 3
    %v78 = vld [vmem:[%s77] sm:$0x1]
    %79 = vrot.lane.b32.xlu0 %v78, 24
    %v80 = vpop.permute.xlu0 %79
    %vm81 = vcmask 261312
    %82 = vst.msk [vmem:[#allocation0] sm:$0x1] %vm81, %v80
    %s83 = scalar_lea.vmem %s0, 2
    %v84 = vld [vmem:[%s83] sm:$0x1]
    %85 = vrot.lane.b32.xlu0 %v84, 16
    %v86 = vpop.permute.xlu0 %85
    %vm87 = vcmask 195712
    %88 = vst.msk [vmem:[#allocation0] sm:$0x1] %vm87, %v86
    %s89 = scalar_lea.vmem %s0, 1
    %v90 = vld [vmem:[%s89] sm:$0x1]
    %91 = vrot.lane.b32.xlu0 %v90, 8
    %v92 = vpop.permute.xlu0 %91
    %vm93 = vcmask 130112
    %94 = vst.msk [vmem:[#allocation0] sm:$0x1] %vm93, %v92
    %s96 = ssub.s32 2, 1
    %v97 = vld [vmem:[#allocation0] sm:%s96]
    %s99 = ssub.s32 2, 1
    %100 = vst [vmem:[%s1] sm:%s99] %v97

// kernel: conv_block_forward.2
$region0: #{conv_block_forward.2}
  #allocation0 [shape = 'u32[]', space=smem, size = 0x4, offset = 0x4, fixed_abs, tag = 'smem constant byte address 0x4 - core index']
  #allocation1 [shape = 'u32[72,128]{1,0:T(1,128)}', space=vmem, size = 0x9000, scoped, tag = 'internal scratch']
  %s0 = inlined_call_operand.vmem [shape: bf16[2,18,128], index: 0, kind: input, shape index: {}]
  %s1 = inlined_call_operand.vmem [shape: bf16[3,128,128], index: 1, kind: input, shape index: {}]
  %s2 = inlined_call_operand.vmem [shape: f32[2,2,128], index: 2, kind: output, shape index: {}]
  %s3 = sld [smem:[#allocation0]]
  $region41: #{conv_block_forward.2} parent=0
    _
  %s5 = ssub.s32 1, %s3
  %s6 = scalar_select 0, %s5, %s3
  loop: start=0, step=1, limit=4
  $region2: #{conv_block_forward.2} parent=0 // loop_pre_header
    _
  $region3: #{conv_block_forward.2} parent=0 // loop_header
    %s8 = sphi 0, %s12
    %p9 = scmp.ge.s32.totalorder %s8, 4
    %s18 = sphi 0, %s20
    %s21 = sphi 0, %s18
    %s22 = sphi 0, %s21
    %s38 = sphi 0, %s22
    %s42 = sphi 0, %s42
    %s44 = sphi 0, %s42
    %s45 = sphi 0, %s44
    %s59 = sphi 0, %s45
    %s65 = sphi 0, %s67
    %s68 = sphi 0, %s65
    %s69 = sphi 0, %s68
    %s85 = sphi 0, %s69
  $region4: #{conv_block_forward.2} parent=0 // loop_header_branch
    %11 = sbr.rel (%p9) target = $region8
  $region5: #{conv_block_forward.2} parent=0 // loop_body
    %s13 = ssub.s32 %s8, 1
    %s14 = ssub.s32 %s8, 2
    %s15 = sadd.s32 %s8, 1
    %s16 = ssub.s32 %s8, %s15
    %p17 = scmp.eq.s32.totalorder %s16, 0
    %s19 = sadd.s32 %s18, 1
    %s20 = scalar_select %p17, %s18, %s19
    %p23 = pneg %p17
    %p24 = scmp.eq.s32.totalorder %s8, 1
    %p25 = por %p23, %p24
    %p26 = scmp.ne.s32.totalorder %s18, %s21
    %p27 = scmp.eq.s32.totalorder %s8, 0
    %p28 = por %p26, %p27
    %p29 = scmp.ne.s32.totalorder %s18, %s21
    %p30 = scmp.eq.s32.totalorder %s13, 1
    %p31 = por %p29, %p30
    %p32 = scmp.ne.s32.totalorder %s21, %s22
    %p33 = scmp.eq.s32.totalorder %s13, 0
    %p34 = por %p32, %p33
    %p35 = scmp.ne.s32.totalorder %s21, %s22
    %p36 = scmp.eq.s32.totalorder %s14, 1
    %p37 = por %p35, %p36
    %p39 = scmp.ne.s32.totalorder %s22, %s38
    %p40 = scmp.eq.s32.totalorder %s14, 0
    %p41 = por %p39, %p40
    %s43 = sadd.s32 %s42, 1
    %p46 = scmp.eq.s32.totalorder %s8, 1
    %p47 = scmp.ne.s32.totalorder %s42, %s44
    %p48 = scmp.eq.s32.totalorder %s8, 0
    %p49 = por %p47, %p48
    %p50 = scmp.ne.s32.totalorder %s42, %s44
    %p51 = scmp.eq.s32.totalorder %s13, 1
    %p52 = por %p50, %p51
    %p53 = scmp.ne.s32.totalorder %s44, %s45
    %p54 = scmp.eq.s32.totalorder %s13, 0
    %p55 = por %p53, %p54
    %p56 = scmp.ne.s32.totalorder %s44, %s45
    %p57 = scmp.eq.s32.totalorder %s14, 1
    %p58 = por %p56, %p57
    %p60 = scmp.ne.s32.totalorder %s45, %s59
    %p61 = scmp.eq.s32.totalorder %s14, 0
    %p62 = por %p60, %p61
    %s63 = ssub.s32 %s8, %s15
    %p64 = scmp.eq.s32.totalorder %s63, 0
    %s66 = sadd.s32 %s65, 1
    %s67 = scalar_select %p64, %s65, %s66
    %p70 = pneg %p64
    %p71 = scmp.eq.s32.totalorder %s8, 1
    %p72 = por %p70, %p71
    %p73 = scmp.ne.s32.totalorder %s65, %s68
    %p74 = scmp.eq.s32.totalorder %s8, 0
    %p75 = por %p73, %p74
    %p76 = scmp.ne.s32.totalorder %s65, %s68
    %p77 = scmp.eq.s32.totalorder %s13, 1
    %p78 = por %p76, %p77
    %p79 = scmp.ne.s32.totalorder %s68, %s69
    %p80 = scmp.eq.s32.totalorder %s13, 0
    %p81 = por %p79, %p80
    %p82 = scmp.ne.s32.totalorder %s68, %s69
    %p83 = scmp.eq.s32.totalorder %s14, 1
    %p84 = por %p82, %p83
    %p86 = scmp.ne.s32.totalorder %s69, %s85
    %p87 = scmp.eq.s32.totalorder %s14, 0
    %p88 = por %p86, %p87
    %p89 = scmp.le.s32.totalorder 1, %s8
    %p90 = scmp.lt.s32.totalorder %s8, 3
    %p91 = pnand %p89, %p90
    %p92 = pneg %p91
    // Predicated region
    $region9: #{conv_block_forward.2} parent=5 // pred_check
      _
    $region10: #{conv_block_forward.2} parent=5 // pred_check_branch
      %94 = sbr.rel (%p91) target = $region12
    $region11: #{conv_block_forward.2} parent=5 // pred_region
      %s95 = ssub.s32 %s8, 1
      // Predicated region
      $region13: #{conv_block_forward.2} parent=11 // pred_check
        %p96 = pneg %p55
      $region14: #{conv_block_forward.2} parent=11 // pred_check_branch
        %98 = sbr.rel (%p96) target = $region16
      $region15: #{conv_block_forward.2} parent=11 // pred_region
        _
      $region16: #{conv_block_forward.2} parent=11 // pred_fallthru
        _
    $region12: #{conv_block_forward.2} parent=5 // pred_fallthru
      _
    %p99 = scmp.lt.s32.totalorder %s8, 2
    // Predicated region
    $region17: #{conv_block_forward.2} parent=5 // pred_check
      %p100 = pneg %p99
    $region18: #{conv_block_forward.2} parent=5 // pred_check_branch
      %102 = sbr.rel (%p100) target = $region20
    $region19: #{conv_block_forward.2} parent=5 // pred_region
      // Predicated region
      $region21: #{conv_block_forward.2} parent=19 // pred_check
        %p103 = pneg %p28
      $region22: #{conv_block_forward.2} parent=19 // pred_check_branch
        %105 = sbr.rel (%p103) target = $region24
      $region23: #{conv_block_forward.2} parent=19 // pred_region
        %p106 = scmp.lt.s32.totalorder %s8, 1
        %s107 = scalar_select %p106, %s8, 1
        %s108 = smul.addr %s107, 3
        %s109 = smul.addr %s108, 4
        %s110 = scalar_lea.vmem %s0, %s109
      $region24: #{conv_block_forward.2} parent=19 // pred_fallthru
        _
    $region20: #{conv_block_forward.2} parent=5 // pred_fallthru
      _
    %p111 = scmp.le.s32.totalorder 1, %s8
    %p112 = scmp.lt.s32.totalorder %s8, 3
    %p113 = pnand %p111, %p112
    %p114 = pneg %p113
    // Predicated region
    $region25: #{conv_block_forward.2} parent=5 // pred_check
      _
    $region26: #{conv_block_forward.2} parent=5 // pred_check_branch
      %116 = sbr.rel (%p113) target = $region28
    $region27: #{conv_block_forward.2} parent=5 // pred_region
      %s117 = ssub.s32 %s8, 1
      %p118 = scmp.lt.s32.totalorder %s13, 1
      %s119 = scalar_select %p118, %s13, 1
      %s120 = smul.addr %s119, 3
      %s121 = smul.addr %s120, 4
      %s122 = scalar_lea.vmem %s0, %s121
      %p123 = pneg %p34
      %p124 = pneg %p31
      %p125 = pneg %p55
      %p126 = pneg %p52
      %p127 = pneg %p81
      %p128 = pneg %p78
      %p129 = scmp.lt.s32.totalorder %s13, 1
      %s130 = scalar_select %p129, %s13, 1
      %s131 = smul.addr %s130, 2
      %s132 = scalar_lea.vmem %s2, %s131
      %p133 = scmp.lt.s32.totalorder %s13, 1
      %s134 = scalar_select %p133, %s13, 1
      %s135 = smul.addr %s134, 3
      %s136 = smul.addr %s135, 4
      %s137 = scalar_lea.vmem %s0, %s136
      %p138 = scmp.lt.s32.totalorder %s13, 1
      %s139 = scalar_select %p138, %s13, 1
      %s140 = smul.addr %s139, 2
      %s141 = scalar_lea.vmem %s2, %s140
      %v142 = vld [vmem:[%s137] sm:$0xf]
      %v143 = vld [vmem:[%s137 + $0x4] sm:$0xf]
      %v144 = vld [vmem:[%s1] sm:$0xf]
      %v145 = vld [vmem:[%s1 + $0x4] sm:$0xf]
      %v146 = vld [vmem:[%s1 + $0x8] sm:$0xf]
      %v147 = vld [vmem:[%s1 + $0xc] sm:$0xf]
      %v148 = vld [vmem:[%s1 + $0x10] sm:$0xf]
      %v149 = vld [vmem:[%s1 + $0x14] sm:$0xf]
      %v150 = vld [vmem:[%s1 + $0x18] sm:$0xf]
      %v151 = vld [vmem:[%s1 + $0x1c] sm:$0xf]
      %v152 = vld [vmem:[%s1 + $0x20] sm:$0xf]
      %v153 = vld [vmem:[%s1 + $0x24] sm:$0xf]
      %v154 = vld [vmem:[%s1 + $0x28] sm:$0xf]
      %v155 = vld [vmem:[%s1 + $0x2c] sm:$0xf]
      %v156 = vld [vmem:[%s1 + $0x30] sm:$0xf]
      %v157 = vld [vmem:[%s1 + $0x34] sm:$0xf]
      %v158 = vld [vmem:[%s1 + $0x38] sm:$0xf]
      %v159 = vld [vmem:[%s1 + $0x3c] sm:$0xf]
      %v160 = vld [vmem:[%s137 + $0x8] sm:$0x1]
      %s161 = scalar_lea.vmem %s1, 64
      %v162 = vld [vmem:[%s161] sm:$0xf]
      %v163 = vld [vmem:[%s161 + $0x4] sm:$0xf]
      %v164 = vld [vmem:[%s161 + $0x8] sm:$0xf]
      %v165 = vld [vmem:[%s161 + $0xc] sm:$0xf]
      %v166 = vld [vmem:[%s161 + $0x10] sm:$0xf]
      %v167 = vld [vmem:[%s161 + $0x14] sm:$0xf]
      %v168 = vld [vmem:[%s161 + $0x18] sm:$0xf]
      %v169 = vld [vmem:[%s161 + $0x1c] sm:$0xf]
      %v170 = vld [vmem:[%s161 + $0x20] sm:$0xf]
      %v171 = vld [vmem:[%s161 + $0x24] sm:$0xf]
      %v172 = vld [vmem:[%s161 + $0x28] sm:$0xf]
      %v173 = vld [vmem:[%s161 + $0x2c] sm:$0xf]
      %v174 = vld [vmem:[%s161 + $0x30] sm:$0xf]
      %v175 = vld [vmem:[%s161 + $0x34] sm:$0xf]
      %v176 = vld [vmem:[%s161 + $0x38] sm:$0xf]
      %v177 = vld [vmem:[%s161 + $0x3c] sm:$0xf]
      %v181 = vunpack.c.l.b16 %v142
      %v182 = vunpack.c.l.b16 %v143
      %v183 = vunpack.c.l.b16 %v160
      %v184 = vpack.c.b16 %v182, %v181
      %v185 = vpack.c.b16 %v183, %v183
      %vm186 = vsmask.f32 7424
      %v188 = vshrl.u32 %v184, 16
      %v190 = vshll.u32 %v184, 16
      %v192 = vrot.slane %v190, 1
      %v193 = vor.u32 %v188, %v192
      %v195 = vshll.u32 %v185, 16
      %v197 = vrot.slane %v195, 1
      %v198 = vsel %vm186, %v193, %v197
      %v216 = vunpack.c.l.b16 %v162
      %v217 = vunpack.c.l.b16 %v163
      %v218 = vunpack.c.l.b16 %v164
      %v219 = vunpack.c.l.b16 %v165
      %v220 = vunpack.c.l.b16 %v166
      %v221 = vunpack.c.l.b16 %v167
      %v222 = vunpack.c.l.b16 %v168
      %v223 = vunpack.c.l.b16 %v169
      %v224 = vunpack.c.l.b16 %v170
      %v225 = vunpack.c.l.b16 %v171
      %v226 = vunpack.c.l.b16 %v172
      %v227 = vunpack.c.l.b16 %v173
      %v228 = vunpack.c.l.b16 %v174
      %v229 = vunpack.c.l.b16 %v175
      %v230 = vunpack.c.l.b16 %v176
      %v231 = vunpack.c.l.b16 %v177
      %v232 = vpack.c.b16 %v217, %v216
      %v233 = vpack.c.b16 %v219, %v218
      %v234 = vpack.c.b16 %v221, %v220
      %v235 = vpack.c.b16 %v223, %v222
      %v236 = vpack.c.b16 %v225, %v224
      %v237 = vpack.c.b16 %v227, %v226
      %v238 = vpack.c.b16 %v229, %v228
      %v239 = vpack.c.b16 %v231, %v230
      %248 = vmatpush.bf16.msra.mxu0 %v239
      %249 = vmatpush.bf16.msra.mxu0 %v238
      %250 = vmatpush.bf16.msra.mxu0 %v237
      %251 = vmatpush.bf16.msra.mxu0 %v236
      %252 = vmatpush.bf16.msra.mxu0 %v235
      %253 = vmatpush.bf16.msra.mxu0 %v234
      %254 = vmatpush.bf16.msra.mxu0 %v233
      %255 = vmatpush.bf16.msra.mxu0 %v232
      %256 = vmatmul.bf16.gmra.mxu0 %v198
      %v257 = vpop.f32.mrf.mxu0
      %v258 = vadd.f32 0.0, %v257
      %v259 = vpop.f32.mrf.mxu0
      %v260 = vadd.f32 0.0, %v259
      %261 = vdwg.mxu0
      %v279 = vunpack.c.l.b16 %v144
      %v280 = vunpack.c.l.b16 %v145
      %v281 = vunpack.c.l.b16 %v146
      %v282 = vunpack.c.l.b16 %v147
      %v283 = vunpack.c.l.b16 %v148
      %v284 = vunpack.c.l.b16 %v149
      %v285 = vunpack.c.l.b16 %v150
      %v286 = vunpack.c.l.b16 %v151
      %v287 = vunpack.c.l.b16 %v152
      %v288 = vunpack.c.l.b16 %v153
      %v289 = vunpack.c.l.b16 %v154
      %v290 = vunpack.c.l.b16 %v155
      %v291 = vunpack.c.l.b16 %v156
      %v292 = vunpack.c.l.b16 %v157
      %v293 = vunpack.c.l.b16 %v158
      %v294 = vunpack.c.l.b16 %v159
      %v295 = vpack.c.b16 %v280, %v279
      %v296 = vpack.c.b16 %v282, %v281
      %v297 = vpack.c.b16 %v284, %v283
      %v298 = vpack.c.b16 %v286, %v285
      %v299 = vpack.c.b16 %v288, %v287
      %v300 = vpack.c.b16 %v290, %v289
      %v301 = vpack.c.b16 %v292, %v291
      %v302 = vpack.c.b16 %v294, %v293
      %311 = vmatpush.bf16.msra.mxu0 %v302
      %312 = vmatpush.bf16.msra.mxu0 %v301
      %313 = vmatpush.bf16.msra.mxu0 %v300
      %314 = vmatpush.bf16.msra.mxu0 %v299
      %315 = vmatpush.bf16.msra.mxu0 %v298
      %316 = vmatpush.bf16.msra.mxu0 %v297
      %317 = vmatpush.bf16.msra.mxu0 %v296
      %318 = vmatpush.bf16.msra.mxu0 %v295
      %319 = vmatmul.bf16.gmra.mxu0 %v184
      %v320 = vpop.f32.mrf.mxu0
      %v321 = vadd.f32 %v258, %v320
      %v322 = vpop.f32.mrf.mxu0
      %v323 = vadd.f32 %v260, %v322
      %324 = vdwg.mxu0
      %v325 = vld [vmem:[%s137] sm:$0xe]
      %s326 = scalar_lea.vmem %s1, 128
      %v327 = vld [vmem:[%s326] sm:$0xf]
      %v328 = vld [vmem:[%s326 + $0x4] sm:$0xf]
      %v329 = vld [vmem:[%s326 + $0x8] sm:$0xf]
      %v330 = vld [vmem:[%s326 + $0xc] sm:$0xf]
      %v331 = vld [vmem:[%s326 + $0x10] sm:$0xf]
      %v332 = vld [vmem:[%s326 + $0x14] sm:$0xf]
      %v333 = vld [vmem:[%s326 + $0x18] sm:$0xf]
      %v334 = vld [vmem:[%s326 + $0x1c] sm:$0xf]
      %v335 = vld [vmem:[%s326 + $0x20] sm:$0xf]
      %v336 = vld [vmem:[%s326 + $0x24] sm:$0xf]
      %v337 = vld [vmem:[%s326 + $0x28] sm:$0xf]
      %v338 = vld [vmem:[%s326 + $0x2c] sm:$0xf]
      %v339 = vld [vmem:[%s326 + $0x30] sm:$0xf]
      %v340 = vld [vmem:[%s326 + $0x34] sm:$0xf]
      %v341 = vld [vmem:[%s326 + $0x38] sm:$0xf]
      %v342 = vld [vmem:[%s326 + $0x3c] sm:$0xf]
      %v344 = vunpack.c.l.b16 %v325
      %v345 = vpack.c.b16 %v182, %v344
      %vm346 = vcmask 1046528
      %v347 = vrot.slane %v345, 1
      %v348 = vrot.slane %v185, 1
      %v349 = vsel %vm346, %v347, %v348
      %v367 = vunpack.c.l.b16 %v327
      %v368 = vunpack.c.l.b16 %v328
      %v369 = vunpack.c.l.b16 %v329
      %v370 = vunpack.c.l.b16 %v330
      %v371 = vunpack.c.l.b16 %v331
      %v372 = vunpack.c.l.b16 %v332
      %v373 = vunpack.c.l.b16 %v333
      %v374 = vunpack.c.l.b16 %v334
      %v375 = vunpack.c.l.b16 %v335
      %v376 = vunpack.c.l.b16 %v336
      %v377 = vunpack.c.l.b16 %v337
      %v378 = vunpack.c.l.b16 %v338
      %v379 = vunpack.c.l.b16 %v339
      %v380 = vunpack.c.l.b16 %v340
      %v381 = vunpack.c.l.b16 %v341
      %v382 = vunpack.c.l.b16 %v342
      %v383 = vpack.c.b16 %v368, %v367
      %v384 = vpack.c.b16 %v370, %v369
      %v385 = vpack.c.b16 %v372, %v371
      %v386 = vpack.c.b16 %v374, %v373
      %v387 = vpack.c.b16 %v376, %v375
      %v388 = vpack.c.b16 %v378, %v377
      %v389 = vpack.c.b16 %v380, %v379
      %v390 = vpack.c.b16 %v382, %v381
      %399 = vmatpush.bf16.msra.mxu0 %v390
      %400 = vmatpush.bf16.msra.mxu0 %v389
      %401 = vmatpush.bf16.msra.mxu0 %v388
      %402 = vmatpush.bf16.msra.mxu0 %v387
      %403 = vmatpush.bf16.msra.mxu0 %v386
      %404 = vmatpush.bf16.msra.mxu0 %v385
      %405 = vmatpush.bf16.msra.mxu0 %v384
      %406 = vmatpush.bf16.msra.mxu0 %v383
      %407 = vmatmul.bf16.gmra.mxu0 %v349
      %v408 = vpop.f32.mrf.mxu0
      %v409 = vadd.f32 0.0, %v408
      %v410 = vpop.f32.mrf.mxu0
      %v411 = vadd.f32 0.0, %v410
      %412 = vdwg.mxu0
      %v413 = vadd.f32 %v321, %v409
      %v414 = vadd.f32 %v323, %v411
      %v415 = vadd.f32 %v413, %v414
      %v416 = vrot.slane %v415, 4
      %v417 = vadd.f32 %v415, %v416
      %v418 = vrot.slane %v417, 2
      %v419 = vadd.f32 %v417, %v418
      %v420 = vrot.slane %v419, 1
      %v421 = vadd.f32 %v419, %v420
      %422 = vst [vmem:[%s141] sm:$0x1] %v421
      %v423 = vmul.f32 %v413, %v413
      %v424 = vmul.f32 %v414, %v414
      %v425 = vadd.f32 %v423, %v424
      %v426 = vrot.slane %v425, 4
      %v427 = vadd.f32 %v425, %v426
      %v428 = vrot.slane %v427, 2
      %v429 = vadd.f32 %v427, %v428
      %v430 = vrot.slane %v429, 1
      %v431 = vadd.f32 %v429, %v430
      %432 = vst [vmem:[%s141 + $0x1] sm:$0x1] %v431
      %p433 = scmp.lt.s32.totalorder %s13, 1
      %s434 = scalar_select %p433, %s13, 1
      %s435 = smul.addr %s434, 2
      %s436 = scalar_lea.vmem %s2, %s435
      // Predicated region
      $region29: #{conv_block_forward.2} parent=27 // pred_check
        %p437 = pneg %p78
      $region30: #{conv_block_forward.2} parent=27 // pred_check_branch
        %439 = sbr.rel (%p437) target = $region32
      $region31: #{conv_block_forward.2} parent=27 // pred_region
        _
      $region32: #{conv_block_forward.2} parent=27 // pred_fallthru
        _
    $region28: #{conv_block_forward.2} parent=5 // pred_fallthru
      _
    %p440 = scmp.le.s32.totalorder 2, %s8
    // Predicated region
    $region33: #{conv_block_forward.2} parent=5 // pred_check
      %p441 = pneg %p440
    $region34: #{conv_block_forward.2} parent=5 // pred_check_branch
      %443 = sbr.rel (%p441) target = $region36
    $region35: #{conv_block_forward.2} parent=5 // pred_region
      %s444 = ssub.s32 %s8, 2
      // Predicated region
      $region37: #{conv_block_forward.2} parent=35 // pred_check
        %p445 = pneg %p84
      $region38: #{conv_block_forward.2} parent=35 // pred_check_branch
        %447 = sbr.rel (%p445) target = $region40
      $region39: #{conv_block_forward.2} parent=35 // pred_region
        %p448 = scmp.lt.s32.totalorder %s14, 1
        %s449 = scalar_select %p448, %s14, 1
        %s450 = smul.addr %s449, 2
        %s451 = scalar_lea.vmem %s2, %s450
      $region40: #{conv_block_forward.2} parent=35 // pred_fallthru
        _
    $region36: #{conv_block_forward.2} parent=5 // pred_fallthru
      _
  $region6: #{conv_block_forward.2} parent=0 // loop_footer
    %s12 = sadd.s32 1, %s8
  $region7: #{conv_block_forward.2} parent=0 // loop_footer_branch
    %7 = sbr.rel target = $region3
  $region8: #{conv_block_forward.2} parent=0 // loop_exit
    _

// kernel: conv_block_forward.3
$region0: #{conv_block_forward.3}
  #allocation0 [shape = 'u32[]', space=smem, size = 0x4, offset = 0x4, fixed_abs, tag = 'smem constant byte address 0x4 - core index']
  #allocation1 [shape = 'u32[72,128]{1,0:T(1,128)}', space=vmem, size = 0x9000, scoped, tag = 'internal scratch']
  %s0 = inlined_call_operand.vmem [shape: bf16[2,18,128], index: 0, kind: input, shape index: {}]
  %s1 = inlined_call_operand.vmem [shape: bf16[3,128,128], index: 1, kind: input, shape index: {}]
  %s2 = inlined_call_operand.vmem [shape: f32[2,128], index: 2, kind: input, shape index: {}]
  %s3 = inlined_call_operand.vmem [shape: f32[2,16,128], index: 3, kind: output, shape index: {}]
  %s4 = sld [smem:[#allocation0]]
  $region45: #{conv_block_forward.3} parent=0
    _
  %s6 = ssub.s32 1, %s4
  %s7 = scalar_select 0, %s6, %s4
  loop: start=0, step=1, limit=4
  $region2: #{conv_block_forward.3} parent=0 // loop_pre_header
    _
  $region3: #{conv_block_forward.3} parent=0 // loop_header
    %s9 = sphi 0, %s13
    %p10 = scmp.ge.s32.totalorder %s9, 4
    %s19 = sphi 0, %s21
    %s22 = sphi 0, %s19
    %s23 = sphi 0, %s22
    %s39 = sphi 0, %s23
    %s43 = sphi 0, %s43
    %s45 = sphi 0, %s43
    %s46 = sphi 0, %s45
    %s60 = sphi 0, %s46
    %s64 = sphi 0, %s64
    %s66 = sphi 0, %s64
    %s67 = sphi 0, %s66
    %s81 = sphi 0, %s67
    %s87 = sphi 0, %s89
    %s90 = sphi 0, %s87
    %s91 = sphi 0, %s90
    %s107 = sphi 0, %s91
  $region4: #{conv_block_forward.3} parent=0 // loop_header_branch
    %12 = sbr.rel (%p10) target = $region8
  $region5: #{conv_block_forward.3} parent=0 // loop_body
    %s14 = ssub.s32 %s9, 1
    %s15 = ssub.s32 %s9, 2
    %s16 = sadd.s32 %s9, 1
    %s17 = ssub.s32 %s9, %s16
    %p18 = scmp.eq.s32.totalorder %s17, 0
    %s20 = sadd.s32 %s19, 1
    %s21 = scalar_select %p18, %s19, %s20
    %p24 = pneg %p18
    %p25 = scmp.eq.s32.totalorder %s9, 1
    %p26 = por %p24, %p25
    %p27 = scmp.ne.s32.totalorder %s19, %s22
    %p28 = scmp.eq.s32.totalorder %s9, 0
    %p29 = por %p27, %p28
    %p30 = scmp.ne.s32.totalorder %s19, %s22
    %p31 = scmp.eq.s32.totalorder %s14, 1
    %p32 = por %p30, %p31
    %p33 = scmp.ne.s32.totalorder %s22, %s23
    %p34 = scmp.eq.s32.totalorder %s14, 0
    %p35 = por %p33, %p34
    %p36 = scmp.ne.s32.totalorder %s22, %s23
    %p37 = scmp.eq.s32.totalorder %s15, 1
    %p38 = por %p36, %p37
    %p40 = scmp.ne.s32.totalorder %s23, %s39
    %p41 = scmp.eq.s32.totalorder %s15, 0
    %p42 = por %p40, %p41
    %s44 = sadd.s32 %s43, 1
    %p47 = scmp.eq.s32.totalorder %s9, 1
    %p48 = scmp.ne.s32.totalorder %s43, %s45
    %p49 = scmp.eq.s32.totalorder %s9, 0
    %p50 = por %p48, %p49
    %p51 = scmp.ne.s32.totalorder %s43, %s45
    %p52 = scmp.eq.s32.totalorder %s14, 1
    %p53 = por %p51, %p52
    %p54 = scmp.ne.s32.totalorder %s45, %s46
    %p55 = scmp.eq.s32.totalorder %s14, 0
    %p56 = por %p54, %p55
    %p57 = scmp.ne.s32.totalorder %s45, %s46
    %p58 = scmp.eq.s32.totalorder %s15, 1
    %p59 = por %p57, %p58
    %p61 = scmp.ne.s32.totalorder %s46, %s60
    %p62 = scmp.eq.s32.totalorder %s15, 0
    %p63 = por %p61, %p62
    %s65 = sadd.s32 %s64, 1
    %p68 = scmp.eq.s32.totalorder %s9, 1
    %p69 = scmp.ne.s32.totalorder %s64, %s66
    %p70 = scmp.eq.s32.totalorder %s9, 0
    %p71 = por %p69, %p70
    %p72 = scmp.ne.s32.totalorder %s64, %s66
    %p73 = scmp.eq.s32.totalorder %s14, 1
    %p74 = por %p72, %p73
    %p75 = scmp.ne.s32.totalorder %s66, %s67
    %p76 = scmp.eq.s32.totalorder %s14, 0
    %p77 = por %p75, %p76
    %p78 = scmp.ne.s32.totalorder %s66, %s67
    %p79 = scmp.eq.s32.totalorder %s15, 1
    %p80 = por %p78, %p79
    %p82 = scmp.ne.s32.totalorder %s67, %s81
    %p83 = scmp.eq.s32.totalorder %s15, 0
    %p84 = por %p82, %p83
    %s85 = ssub.s32 %s9, %s16
    %p86 = scmp.eq.s32.totalorder %s85, 0
    %s88 = sadd.s32 %s87, 1
    %s89 = scalar_select %p86, %s87, %s88
    %p92 = pneg %p86
    %p93 = scmp.eq.s32.totalorder %s9, 1
    %p94 = por %p92, %p93
    %p95 = scmp.ne.s32.totalorder %s87, %s90
    %p96 = scmp.eq.s32.totalorder %s9, 0
    %p97 = por %p95, %p96
    %p98 = scmp.ne.s32.totalorder %s87, %s90
    %p99 = scmp.eq.s32.totalorder %s14, 1
    %p100 = por %p98, %p99
    %p101 = scmp.ne.s32.totalorder %s90, %s91
    %p102 = scmp.eq.s32.totalorder %s14, 0
    %p103 = por %p101, %p102
    %p104 = scmp.ne.s32.totalorder %s90, %s91
    %p105 = scmp.eq.s32.totalorder %s15, 1
    %p106 = por %p104, %p105
    %p108 = scmp.ne.s32.totalorder %s91, %s107
    %p109 = scmp.eq.s32.totalorder %s15, 0
    %p110 = por %p108, %p109
    %p111 = scmp.le.s32.totalorder 1, %s9
    %p112 = scmp.lt.s32.totalorder %s9, 3
    %p113 = pnand %p111, %p112
    %p114 = pneg %p113
    // Predicated region
    $region9: #{conv_block_forward.3} parent=5 // pred_check
      _
    $region10: #{conv_block_forward.3} parent=5 // pred_check_branch
      %116 = sbr.rel (%p113) target = $region12
    $region11: #{conv_block_forward.3} parent=5 // pred_region
      %s117 = ssub.s32 %s9, 1
      // Predicated region
      $region13: #{conv_block_forward.3} parent=11 // pred_check
        %p118 = pneg %p56
      $region14: #{conv_block_forward.3} parent=11 // pred_check_branch
        %120 = sbr.rel (%p118) target = $region16
      $region15: #{conv_block_forward.3} parent=11 // pred_region
        _
      $region16: #{conv_block_forward.3} parent=11 // pred_fallthru
        _
      // Predicated region
      $region17: #{conv_block_forward.3} parent=11 // pred_check
        %p121 = pneg %p77
      $region18: #{conv_block_forward.3} parent=11 // pred_check_branch
        %123 = sbr.rel (%p121) target = $region20
      $region19: #{conv_block_forward.3} parent=11 // pred_region
        _
      $region20: #{conv_block_forward.3} parent=11 // pred_fallthru
        _
    $region12: #{conv_block_forward.3} parent=5 // pred_fallthru
      _
    %p124 = scmp.lt.s32.totalorder %s9, 2
    // Predicated region
    $region21: #{conv_block_forward.3} parent=5 // pred_check
      %p125 = pneg %p124
    $region22: #{conv_block_forward.3} parent=5 // pred_check_branch
      %127 = sbr.rel (%p125) target = $region24
    $region23: #{conv_block_forward.3} parent=5 // pred_region
      // Predicated region
      $region25: #{conv_block_forward.3} parent=23 // pred_check
        %p128 = pneg %p29
      $region26: #{conv_block_forward.3} parent=23 // pred_check_branch
        %130 = sbr.rel (%p128) target = $region28
      $region27: #{conv_block_forward.3} parent=23 // pred_region
        %p131 = scmp.lt.s32.totalorder %s9, 1
        %s132 = scalar_select %p131, %s9, 1
        %s133 = smul.addr %s132, 3
        %s134 = smul.addr %s133, 4
        %s135 = scalar_lea.vmem %s0, %s134
      $region28: #{conv_block_forward.3} parent=23 // pred_fallthru
        _
    $region24: #{conv_block_forward.3} parent=5 // pred_fallthru
      _
    %p136 = scmp.le.s32.totalorder 1, %s9
    %p137 = scmp.lt.s32.totalorder %s9, 3
    %p138 = pnand %p136, %p137
    %p139 = pneg %p138
    // Predicated region
    $region29: #{conv_block_forward.3} parent=5 // pred_check
      _
    $region30: #{conv_block_forward.3} parent=5 // pred_check_branch
      %141 = sbr.rel (%p138) target = $region32
    $region31: #{conv_block_forward.3} parent=5 // pred_region
      %s142 = ssub.s32 %s9, 1
      %p143 = scmp.lt.s32.totalorder %s14, 1
      %s144 = scalar_select %p143, %s14, 1
      %s145 = smul.addr %s144, 3
      %s146 = smul.addr %s145, 4
      %s147 = scalar_lea.vmem %s0, %s146
      %p148 = pneg %p35
      %p149 = pneg %p32
      %p150 = pneg %p56
      %p151 = pneg %p53
      %p152 = pneg %p77
      %p153 = pneg %p74
      %p154 = pneg %p103
      %p155 = pneg %p100
      %p156 = scmp.lt.s32.totalorder %s14, 1
      %s157 = scalar_select %p156, %s14, 1
      %s158 = smul.addr %s157, 2
      %s159 = smul.addr %s158, 8
      %s160 = scalar_lea.vmem %s3, %s159
      %p161 = scmp.lt.s32.totalorder %s14, 1
      %s162 = scalar_select %p161, %s14, 1
      %s163 = smul.addr %s162, 3
      %s164 = smul.addr %s163, 4
      %s165 = scalar_lea.vmem %s0, %s164
      %p166 = scmp.lt.s32.totalorder %s14, 1
      %s167 = scalar_select %p166, %s14, 1
      %s168 = smul.addr %s167, 2
      %s169 = smul.addr %s168, 8
      %s170 = scalar_lea.vmem %s3, %s169
      %v171 = vld [vmem:[%s165] sm:$0xf]
      %v172 = vld [vmem:[%s165 + $0x4] sm:$0xf]
      %v173 = vld [vmem:[%s1] sm:$0xf]
      %v174 = vld [vmem:[%s1 + $0x4] sm:$0xf]
      %v175 = vld [vmem:[%s1 + $0x8] sm:$0xf]
      %v176 = vld [vmem:[%s1 + $0xc] sm:$0xf]
      %v177 = vld [vmem:[%s1 + $0x10] sm:$0xf]
      %v178 = vld [vmem:[%s1 + $0x14] sm:$0xf]
      %v179 = vld [vmem:[%s1 + $0x18] sm:$0xf]
      %v180 = vld [vmem:[%s1 + $0x1c] sm:$0xf]
      %v181 = vld [vmem:[%s1 + $0x20] sm:$0xf]
      %v182 = vld [vmem:[%s1 + $0x24] sm:$0xf]
      %v183 = vld [vmem:[%s1 + $0x28] sm:$0xf]
      %v184 = vld [vmem:[%s1 + $0x2c] sm:$0xf]
      %v185 = vld [vmem:[%s1 + $0x30] sm:$0xf]
      %v186 = vld [vmem:[%s1 + $0x34] sm:$0xf]
      %v187 = vld [vmem:[%s1 + $0x38] sm:$0xf]
      %v188 = vld [vmem:[%s1 + $0x3c] sm:$0xf]
      %v189 = vld [vmem:[%s165 + $0x8] sm:$0x1]
      %s190 = scalar_lea.vmem %s1, 64
      %v191 = vld [vmem:[%s190] sm:$0xf]
      %v192 = vld [vmem:[%s190 + $0x4] sm:$0xf]
      %v193 = vld [vmem:[%s190 + $0x8] sm:$0xf]
      %v194 = vld [vmem:[%s190 + $0xc] sm:$0xf]
      %v195 = vld [vmem:[%s190 + $0x10] sm:$0xf]
      %v196 = vld [vmem:[%s190 + $0x14] sm:$0xf]
      %v197 = vld [vmem:[%s190 + $0x18] sm:$0xf]
      %v198 = vld [vmem:[%s190 + $0x1c] sm:$0xf]
      %v199 = vld [vmem:[%s190 + $0x20] sm:$0xf]
      %v200 = vld [vmem:[%s190 + $0x24] sm:$0xf]
      %v201 = vld [vmem:[%s190 + $0x28] sm:$0xf]
      %v202 = vld [vmem:[%s190 + $0x2c] sm:$0xf]
      %v203 = vld [vmem:[%s190 + $0x30] sm:$0xf]
      %v204 = vld [vmem:[%s190 + $0x34] sm:$0xf]
      %v205 = vld [vmem:[%s190 + $0x38] sm:$0xf]
      %v206 = vld [vmem:[%s190 + $0x3c] sm:$0xf]
      %v210 = vunpack.c.l.b16 %v171
      %v211 = vunpack.c.l.b16 %v172
      %v212 = vunpack.c.l.b16 %v189
      %v213 = vpack.c.b16 %v211, %v210
      %v214 = vpack.c.b16 %v212, %v212
      %vm215 = vsmask.f32 7424
      %v217 = vshrl.u32 %v213, 16
      %v219 = vshll.u32 %v213, 16
      %v221 = vrot.slane %v219, 1
      %v222 = vor.u32 %v217, %v221
      %v224 = vshll.u32 %v214, 16
      %v226 = vrot.slane %v224, 1
      %v227 = vsel %vm215, %v222, %v226
      %v245 = vunpack.c.l.b16 %v191
      %v246 = vunpack.c.l.b16 %v192
      %v247 = vunpack.c.l.b16 %v193
      %v248 = vunpack.c.l.b16 %v194
      %v249 = vunpack.c.l.b16 %v195
      %v250 = vunpack.c.l.b16 %v196
      %v251 = vunpack.c.l.b16 %v197
      %v252 = vunpack.c.l.b16 %v198
      %v253 = vunpack.c.l.b16 %v199
      %v254 = vunpack.c.l.b16 %v200
      %v255 = vunpack.c.l.b16 %v201
      %v256 = vunpack.c.l.b16 %v202
      %v257 = vunpack.c.l.b16 %v203
      %v258 = vunpack.c.l.b16 %v204
      %v259 = vunpack.c.l.b16 %v205
      %v260 = vunpack.c.l.b16 %v206
      %v261 = vpack.c.b16 %v246, %v245
      %v262 = vpack.c.b16 %v248, %v247
      %v263 = vpack.c.b16 %v250, %v249
      %v264 = vpack.c.b16 %v252, %v251
      %v265 = vpack.c.b16 %v254, %v253
      %v266 = vpack.c.b16 %v256, %v255
      %v267 = vpack.c.b16 %v258, %v257
      %v268 = vpack.c.b16 %v260, %v259
      %277 = vmatpush.bf16.msra.mxu0 %v268
      %278 = vmatpush.bf16.msra.mxu0 %v267
      %279 = vmatpush.bf16.msra.mxu0 %v266
      %280 = vmatpush.bf16.msra.mxu0 %v265
      %281 = vmatpush.bf16.msra.mxu0 %v264
      %282 = vmatpush.bf16.msra.mxu0 %v263
      %283 = vmatpush.bf16.msra.mxu0 %v262
      %284 = vmatpush.bf16.msra.mxu0 %v261
      %285 = vmatmul.bf16.gmra.mxu0 %v227
      %v286 = vpop.f32.mrf.mxu0
      %v287 = vadd.f32 0.0, %v286
      %v288 = vpop.f32.mrf.mxu0
      %v289 = vadd.f32 0.0, %v288
      %290 = vdwg.mxu0
      %v308 = vunpack.c.l.b16 %v173
      %v309 = vunpack.c.l.b16 %v174
      %v310 = vunpack.c.l.b16 %v175
      %v311 = vunpack.c.l.b16 %v176
      %v312 = vunpack.c.l.b16 %v177
      %v313 = vunpack.c.l.b16 %v178
      %v314 = vunpack.c.l.b16 %v179
      %v315 = vunpack.c.l.b16 %v180
      %v316 = vunpack.c.l.b16 %v181
      %v317 = vunpack.c.l.b16 %v182
      %v318 = vunpack.c.l.b16 %v183
      %v319 = vunpack.c.l.b16 %v184
      %v320 = vunpack.c.l.b16 %v185
      %v321 = vunpack.c.l.b16 %v186
      %v322 = vunpack.c.l.b16 %v187
      %v323 = vunpack.c.l.b16 %v188
      %v324 = vpack.c.b16 %v309, %v308
      %v325 = vpack.c.b16 %v311, %v310
      %v326 = vpack.c.b16 %v313, %v312
      %v327 = vpack.c.b16 %v315, %v314
      %v328 = vpack.c.b16 %v317, %v316
      %v329 = vpack.c.b16 %v319, %v318
      %v330 = vpack.c.b16 %v321, %v320
      %v331 = vpack.c.b16 %v323, %v322
      %340 = vmatpush.bf16.msra.mxu0 %v331
      %341 = vmatpush.bf16.msra.mxu0 %v330
      %342 = vmatpush.bf16.msra.mxu0 %v329
      %343 = vmatpush.bf16.msra.mxu0 %v328
      %344 = vmatpush.bf16.msra.mxu0 %v327
      %345 = vmatpush.bf16.msra.mxu0 %v326
      %346 = vmatpush.bf16.msra.mxu0 %v325
      %347 = vmatpush.bf16.msra.mxu0 %v324
      %348 = vmatmul.bf16.gmra.mxu0 %v213
      %v349 = vpop.f32.mrf.mxu0
      %v350 = vadd.f32 %v287, %v349
      %v351 = vpop.f32.mrf.mxu0
      %v352 = vadd.f32 %v289, %v351
      %353 = vdwg.mxu0
      %v354 = vld [vmem:[%s165] sm:$0xe]
      %s355 = scalar_lea.vmem %s1, 128
      %v356 = vld [vmem:[%s355] sm:$0xf]
      %v357 = vld [vmem:[%s355 + $0x4] sm:$0xf]
      %v358 = vld [vmem:[%s355 + $0x8] sm:$0xf]
      %v359 = vld [vmem:[%s355 + $0xc] sm:$0xf]
      %v360 = vld [vmem:[%s355 + $0x10] sm:$0xf]
      %v361 = vld [vmem:[%s355 + $0x14] sm:$0xf]
      %v362 = vld [vmem:[%s355 + $0x18] sm:$0xf]
      %v363 = vld [vmem:[%s355 + $0x1c] sm:$0xf]
      %v364 = vld [vmem:[%s355 + $0x20] sm:$0xf]
      %v365 = vld [vmem:[%s355 + $0x24] sm:$0xf]
      %v366 = vld [vmem:[%s355 + $0x28] sm:$0xf]
      %v367 = vld [vmem:[%s355 + $0x2c] sm:$0xf]
      %v368 = vld [vmem:[%s355 + $0x30] sm:$0xf]
      %v369 = vld [vmem:[%s355 + $0x34] sm:$0xf]
      %v370 = vld [vmem:[%s355 + $0x38] sm:$0xf]
      %v371 = vld [vmem:[%s355 + $0x3c] sm:$0xf]
      %v373 = vunpack.c.l.b16 %v354
      %v374 = vpack.c.b16 %v211, %v373
      %vm375 = vcmask 1046528
      %v376 = vrot.slane %v374, 1
      %v377 = vrot.slane %v214, 1
      %v378 = vsel %vm375, %v376, %v377
      %v396 = vunpack.c.l.b16 %v356
      %v397 = vunpack.c.l.b16 %v357
      %v398 = vunpack.c.l.b16 %v358
      %v399 = vunpack.c.l.b16 %v359
      %v400 = vunpack.c.l.b16 %v360
      %v401 = vunpack.c.l.b16 %v361
      %v402 = vunpack.c.l.b16 %v362
      %v403 = vunpack.c.l.b16 %v363
      %v404 = vunpack.c.l.b16 %v364
      %v405 = vunpack.c.l.b16 %v365
      %v406 = vunpack.c.l.b16 %v366
      %v407 = vunpack.c.l.b16 %v367
      %v408 = vunpack.c.l.b16 %v368
      %v409 = vunpack.c.l.b16 %v369
      %v410 = vunpack.c.l.b16 %v370
      %v411 = vunpack.c.l.b16 %v371
      %v412 = vpack.c.b16 %v397, %v396
      %v413 = vpack.c.b16 %v399, %v398
      %v414 = vpack.c.b16 %v401, %v400
      %v415 = vpack.c.b16 %v403, %v402
      %v416 = vpack.c.b16 %v405, %v404
      %v417 = vpack.c.b16 %v407, %v406
      %v418 = vpack.c.b16 %v409, %v408
      %v419 = vpack.c.b16 %v411, %v410
      %428 = vmatpush.bf16.msra.mxu0 %v419
      %429 = vmatpush.bf16.msra.mxu0 %v418
      %430 = vmatpush.bf16.msra.mxu0 %v417
      %431 = vmatpush.bf16.msra.mxu0 %v416
      %432 = vmatpush.bf16.msra.mxu0 %v415
      %433 = vmatpush.bf16.msra.mxu0 %v414
      %434 = vmatpush.bf16.msra.mxu0 %v413
      %435 = vmatpush.bf16.msra.mxu0 %v412
      %436 = vmatmul.bf16.gmra.mxu0 %v378
      %v437 = vpop.f32.mrf.mxu0
      %v438 = vadd.f32 0.0, %v437
      %v439 = vpop.f32.mrf.mxu0
      %v440 = vadd.f32 0.0, %v439
      %441 = vdwg.mxu0
      %v442 = vadd.f32 %v350, %v438
      %v443 = vadd.f32 %v352, %v440
      %v444 = vld [vmem:[%s2] sm:$0x1]
      %v445 = vld [vmem:[%s2 + $0x1] sm:$0x1]
      %v446 = vperm.slane %v444, 0
      %v447 = vmul.f32 %v442, %v446
      %v448 = vmul.f32 %v443, %v446
      %v449 = vperm.slane %v445, 0
      %v450 = vadd.f32 %v447, %v449
      %v451 = vadd.f32 %v448, %v449
      %v452 = vmax.f32 %v450, 0.0
      %v453 = vmax.f32 %v451, 0.0
      %454 = vst [vmem:[%s170] sm:$0xff] %v452
      %455 = vst [vmem:[%s170 + $0x8] sm:$0xff] %v453
      %p456 = scmp.lt.s32.totalorder %s14, 1
      %s457 = scalar_select %p456, %s14, 1
      %s458 = smul.addr %s457, 2
      %s459 = smul.addr %s458, 8
      %s460 = scalar_lea.vmem %s3, %s459
      // Predicated region
      $region33: #{conv_block_forward.3} parent=31 // pred_check
        %p461 = pneg %p100
      $region34: #{conv_block_forward.3} parent=31 // pred_check_branch
        %463 = sbr.rel (%p461) target = $region36
      $region35: #{conv_block_forward.3} parent=31 // pred_region
        _
      $region36: #{conv_block_forward.3} parent=31 // pred_fallthru
        _
    $region32: #{conv_block_forward.3} parent=5 // pred_fallthru
      _
    %p464 = scmp.le.s32.totalorder 2, %s9
    // Predicated region
    $region37: #{conv_block_forward.3} parent=5 // pred_check
      %p465 = pneg %p464
    $region38: #{conv_block_forward.3} parent=5 // pred_check_branch
      %467 = sbr.rel (%p465) target = $region40
    $region39: #{conv_block_forward.3} parent=5 // pred_region
      %s468 = ssub.s32 %s9, 2
      // Predicated region
      $region41: #{conv_block_forward.3} parent=39 // pred_check
        %p469 = pneg %p106
      $region42: #{conv_block_forward.3} parent=39 // pred_check_branch
        %471 = sbr.rel (%p469) target = $region44
      $region43: #{conv_block_forward.3} parent=39 // pred_region
        %p472 = scmp.lt.s32.totalorder %s15, 1
        %s473 = scalar_select %p472, %s15, 1
        %s474 = smul.addr %s473, 2
        %s475 = smul.addr %s474, 8
        %s476 = scalar_lea.vmem %s3, %s475
      $region44: #{conv_block_forward.3} parent=39 // pred_fallthru
        _
    $region40: #{conv_block_forward.3} parent=5 // pred_fallthru
      _
  $region6: #{conv_block_forward.3} parent=0 // loop_footer
    %s13 = sadd.s32 1, %s9
  $region7: #{conv_block_forward.3} parent=0 // loop_footer_branch
    %8 = sbr.rel target = $region3
  $region8: #{conv_block_forward.3} parent=0 // loop_exit
    _

</llo_original>
